<compile_context>
chip_gen: v7x
topology: tpu7x:2x2x1
jax: 0.10.0
libtpu: 0.0.40
codegen_flags: <defaults>
</compile_context>

<pallas_src>
import math

import jax
import jax.numpy as jnp
from jax import lax
from jax.experimental import pallas as pl
from jax.experimental.pallas import tpu as pltpu

ENCODING_DIMENSIONS = 32          # model.params['encoding_dimensions']
HIDDEN = 8                        # nn.Linear(enc_dim, 8)
ACTION_SIZE = (2,)                # action_size
ACTION_DIMS = int(math.prod(ACTION_SIZE))
MAX_TILE_B = 8192                 # max batch lanes per grid step (multiple of 128)


def _round_up(x, m):
    return ((x + m - 1) // m) * m


def _pick_tile_b(b):
    """Batch-lane tile: as big as useful, but keep >=2 grid steps when possible
    so the 'parallel' batch axis can use both TensorCores on v7x."""
    half = _round_up(max(pl.cdiv(b, 2), 1), 128)
    return max(128, min(MAX_TILE_B, half))


def ltd_policy_kernel(w1T_ref, b1_ref, w2T_ref, b2_ref, x_ref, o_ref):
    """One batch tile of the policy MLP; batch lives on the lane axis of o_ref.

    w1T_ref: (H, D)     b1_ref: (H, 1)     w2T_ref: (A, H)     b2_ref: (A, 1)
    x_ref:   (TILE_B, D)  recall vectors in native (B, D) layout (no transpose)
    o_ref:   (A, TILE_B)  tanh actions, batch on lanes (lane-dense stores)
    """
    x = x_ref[...]                                             # (TILE_B, D)
    # (H, D) . (TILE_B, D) contracted over D -> (H, TILE_B); MXU folds the
    # operand orientation, so no explicit transpose of the input is needed.
    h = lax.dot_general(
        w1T_ref[...], x,
        dimension_numbers=(((1,), (1,)), ((), ())),
        precision=lax.Precision.HIGHEST,
        preferred_element_type=jnp.float32) + b1_ref[...]       # (H, TILE_B)
    h = jnp.maximum(h, 0.0)                                     # ReLU
    y = jnp.dot(w2T_ref[...], h,
                precision=lax.Precision.HIGHEST,
                preferred_element_type=jnp.float32) + b2_ref[...]  # (A, TILE_B)
    o_ref[...] = jnp.tanh(y)                                    # Tanh


def prep_params(w1, b1, w2, b2):
    """(D,H), (H,), (H,A), (A,)  ->  kernel layout (H,D), (H,1), (A,H), (A,1), f32."""
    return (w1.T.astype(jnp.float32),
            b1.reshape(-1, 1).astype(jnp.float32),
            w2.T.astype(jnp.float32),
            b2.reshape(-1, 1).astype(jnp.float32))


def ltd_forward_batched(recalls, params, *, lane_dense_output=False):
    """Batched Pallas forward: recalls (B, D) -> actions (B, A) [or (A, B)]."""
    w1T, b1c, w2T, b2c = params
    recalls = recalls.astype(jnp.float32)
    b, d = recalls.shape
    h_dim = w1T.shape[0]
    a_dim = w2T.shape[0]

    tile_b = _pick_tile_b(b)
    grid = (pl.cdiv(b, tile_b),)        # ragged tail block is masked by Pallas

    out = pl.pallas_call(
        ltd_policy_kernel,
        out_shape=jax.ShapeDtypeStruct((a_dim, b), jnp.float32),
        grid=grid,
        in_specs=[
            # Tiny weights/biases: constant index_map -> one DMA, kept resident.
            pl.BlockSpec((h_dim, d), lambda i: (0, 0)),
            pl.BlockSpec((h_dim, 1), lambda i: (0, 0)),
            pl.BlockSpec((a_dim, h_dim), lambda i: (0, 0)),
            pl.BlockSpec((a_dim, 1), lambda i: (0, 0)),
            # Recall tile in native (B, D) layout: HBM-contiguous, no XLA transpose.
            pl.BlockSpec((tile_b, d), lambda i: (i, 0)),
        ],
        # Lane-dense output tile: batch on lanes -> unmasked vector stores.
        out_specs=pl.BlockSpec((a_dim, tile_b), lambda i: (0, i)),
        compiler_params=pltpu.CompilerParams(
            dimension_semantics=("parallel",)),   # shard batch across TCs (v7x)
    )(w1T, b1c, w2T, b2c, recalls)

    if lane_dense_output:
        return out            # (A, B): avoids even the small final transpose
    return out.T              # (B, A): A=2, ~6% of the input bytes -- negligible


def ltd_forward(recall, params):
    """Single-sample forward matching ltd.forward: (D,) -> action_size.

    Per the perf review: a fused jnp expression (no Pallas custom-call dispatch)
    is the right path for a single 32-float vector.
    """
    w1T, b1c, w2T, b2c = params
    x = recall.astype(jnp.float32)
    h = jnp.maximum(
        jnp.dot(w1T, x, precision=lax.Precision.HIGHEST) + b1c[:, 0], 0.0)
    y = jnp.tanh(
        jnp.dot(w2T, h, precision=lax.Precision.HIGHEST) + b2c[:, 0])
    return y.reshape(*ACTION_SIZE)


def init_params(key, enc_dim=ENCODING_DIMENSIONS, hidden=HIDDEN,
                action_dims=ACTION_DIMS):
    """Deterministic PyTorch-Linear-style init: U(-1/sqrt(fan_in), 1/sqrt(fan_in))."""
    k1, k2, k3, k4 = jax.random.split(key, 4)
    lim1 = 1.0 / jnp.sqrt(jnp.float32(enc_dim))
    lim2 = 1.0 / jnp.sqrt(jnp.float32(hidden))
    # stored (in_features, out_features); transposed to kernel layout by prep_params
    w1 = jax.random.uniform(k1, (enc_dim, hidden), jnp.float32, -lim1, lim1)
    b1 = jax.random.uniform(k2, (hidden,), jnp.float32, -lim1, lim1)
    w2 = jax.random.uniform(k3, (hidden, action_dims), jnp.float32, -lim2, lim2)
    b2 = jax.random.uniform(k4, (action_dims,), jnp.float32, -lim2, lim2)
    return w1, b1, w2, b2


def ltd_forward_ref(recalls, w1, b1, w2, b2):
    """Pure-JAX reference of the same forward pass (batched), full-f32 matmuls."""
    h = jnp.maximum(
        jnp.dot(recalls, w1, precision=lax.Precision.HIGHEST) + b1, 0.0)
    return jnp.tanh(jnp.dot(h, w2, precision=lax.Precision.HIGHEST) + b2)


# TODO(synk): ltd.sense()/recognition() depend on the external VAE encoder and
# F.interpolate and are outside forward(); not implemented here.


if __name__ == "__main__":
    key = jax.random.PRNGKey(0)
    k_params, k_recall = jax.random.split(key)

    w1, b1, w2, b2 = init_params(k_params)
    params = prep_params(w1, b1, w2, b2)

    # Batched Pallas path. B=200 is small but exercises both a multi-step grid
    # (2 steps -> both TCs on v7x) and the ragged trailing block (no jnp.pad).
    B = 200
    recalls = jax.random.normal(k_recall, (B, ENCODING_DIMENSIONS), jnp.float32)

    out = jax.block_until_ready(ltd_forward_batched(recalls, params))
    ref = ltd_forward_ref(recalls, w1, b1, w2, b2)
    assert out.shape == (B, ACTION_DIMS), out.shape
    assert jnp.allclose(out, ref, atol=1e-5, rtol=1e-5), (out[:2], ref[:2])

    # Lane-dense (A, B) variant for consumers that want to skip the final transpose.
    out_ld = jax.block_until_ready(
        ltd_forward_batched(recalls, params, lane_dense_output=True))
    assert out_ld.shape == (ACTION_DIMS, B), out_ld.shape
    assert jnp.allclose(out_ld.T, ref, atol=1e-5, rtol=1e-5)

    # Original single-sample semantics: (enc_dim,) -> action_size == (2,),
    # evaluated as fused jnp (no Pallas dispatch for a single 32-float vector).
    single = jax.block_until_ready(ltd_forward(recalls[0], params))
    assert single.shape == ACTION_SIZE, single.shape
    assert jnp.allclose(single, ref[0].reshape(*ACTION_SIZE),
                        atol=1e-5, rtol=1e-5), (single, ref[0])

    print("KERNEL_OK")
</pallas_src>

<mosaic_0001>
module attributes {stable_mosaic.version = 11 : i64} {
  func.func @ltd_policy_kernel(%arg0: i32, %arg1: memref<8x32xf32, #tpu.memory_space<vmem>>, %arg2: memref<8x1xf32, #tpu.memory_space<vmem>>, %arg3: memref<2x8xf32, #tpu.memory_space<vmem>>, %arg4: memref<2x1xf32, #tpu.memory_space<vmem>>, %arg5: memref<128x32xf32, #tpu.memory_space<vmem>>, %arg6: memref<2x128xf32, #tpu.memory_space<vmem>>) attributes {dimension_semantics = [#tpu.dimension_semantics<parallel>], iteration_bounds = array<i64: 2>, scalar_prefetch = 0 : i64, scratch_operands = 0 : i64, tpu.core_type = #tpu.core_type<tc>, window_params = [{pipeline_mode = #tpu.pipeline_mode<synchronous>, transform_indices = @transform_0, window_bounds = array<i64: 8, 32>}, {pipeline_mode = #tpu.pipeline_mode<synchronous>, transform_indices = @transform_1, window_bounds = array<i64: 8, 1>}, {pipeline_mode = #tpu.pipeline_mode<synchronous>, transform_indices = @transform_2, window_bounds = array<i64: 2, 8>}, {pipeline_mode = #tpu.pipeline_mode<synchronous>, transform_indices = @transform_3, window_bounds = array<i64: 2, 1>}, {transform_indices = @transform_4, window_bounds = array<i64: 128, 32>}, {transform_indices = @transform_5, window_bounds = array<i64: 2, 128>}]} {
    %c0 = arith.constant 0 : index
    %c0_0 = arith.constant 0 : index
    %0 = vector.load %arg5[%c0, %c0_0] : memref<128x32xf32, #tpu.memory_space<vmem>>, vector<128x32xf32>
    %c0_1 = arith.constant 0 : index
    %c0_2 = arith.constant 0 : index
    %1 = vector.load %arg1[%c0_1, %c0_2] : memref<8x32xf32, #tpu.memory_space<vmem>>, vector<8x32xf32>
    %cst = arith.constant dense<0.000000e+00> : vector<8x128xf32>
    %2 = tpu.matmul %1, %0, %cst {dimension_numbers = #tpu.dot_dimension_numbers<[1], [1], [0], [0], [0, 0, 1, 0], [], []>, precision = #tpu.contract_precision<fp32>} : vector<8x32xf32>, vector<128x32xf32>, vector<8x128xf32> -> vector<8x128xf32>
    %c0_3 = arith.constant 0 : index
    %c0_4 = arith.constant 0 : index
    %3 = vector.load %arg2[%c0_3, %c0_4] : memref<8x1xf32, #tpu.memory_space<vmem>>, vector<8x1xf32>
    %4 = vector.broadcast %3 : vector<8x1xf32> to vector<8x128xf32>
    %5 = arith.addf %2, %4 : vector<8x128xf32>
    %cst_5 = arith.constant 0.000000e+00 : f32
    %6 = vector.broadcast %cst_5 : f32 to vector<8x128xf32>
    %7 = arith.maximumf %5, %6 : vector<8x128xf32>
    %c0_6 = arith.constant 0 : index
    %c0_7 = arith.constant 0 : index
    %8 = vector.load %arg3[%c0_6, %c0_7] : memref<2x8xf32, #tpu.memory_space<vmem>>, vector<2x8xf32>
    %cst_8 = arith.constant dense<0.000000e+00> : vector<2x128xf32>
    %9 = tpu.matmul %8, %7, %cst_8 {dimension_numbers = #tpu.dot_dimension_numbers<[1], [0], [0], [1], [0, 0, 1, 1], [], []>, precision = #tpu.contract_precision<fp32>} : vector<2x8xf32>, vector<8x128xf32>, vector<2x128xf32> -> vector<2x128xf32>
    %c0_9 = arith.constant 0 : index
    %c0_10 = arith.constant 0 : index
    %10 = vector.load %arg4[%c0_9, %c0_10] : memref<2x1xf32, #tpu.memory_space<vmem>>, vector<2x1xf32>
    %11 = vector.broadcast %10 : vector<2x1xf32> to vector<2x128xf32>
    %12 = arith.addf %9, %11 : vector<2x128xf32>
    %13 = math.tanh %12 : vector<2x128xf32>
    %c0_11 = arith.constant 0 : index
    %c0_12 = arith.constant 0 : index
    %14 = vector.load %arg6[%c0_11, %c0_12] : memref<2x128xf32, #tpu.memory_space<vmem>>, vector<2x128xf32>
    tpu.vector_store %arg6[%c0_11, %c0_12], %13 {strides = array<i32>} : memref<2x128xf32, #tpu.memory_space<vmem>>, vector<2x128xf32>,
    return
  }
  func.func @transform_0(%arg0: i32) -> (i32, i32) {
    %c0_i32 = arith.constant 0 : i32
    %c0_i32_0 = arith.constant 0 : i32
    %c0_i32_1 = arith.constant 0 : i32
    return %c0_i32, %c0_i32_0 : i32, i32
  }
  func.func @transform_1(%arg0: i32) -> (i32, i32) {
    %c0_i32 = arith.constant 0 : i32
    %c0_i32_0 = arith.constant 0 : i32
    %c0_i32_1 = arith.constant 0 : i32
    return %c0_i32, %c0_i32_0 : i32, i32
  }
  func.func @transform_2(%arg0: i32) -> (i32, i32) {
    %c0_i32 = arith.constant 0 : i32
    %c0_i32_0 = arith.constant 0 : i32
    %c0_i32_1 = arith.constant 0 : i32
    return %c0_i32, %c0_i32_0 : i32, i32
  }
  func.func @transform_3(%arg0: i32) -> (i32, i32) {
    %c0_i32 = arith.constant 0 : i32
    %c0_i32_0 = arith.constant 0 : i32
    %c0_i32_1 = arith.constant 0 : i32
    return %c0_i32, %c0_i32_0 : i32, i32
  }
  func.func @transform_4(%arg0: i32) -> (i32, i32) {
    %c0_i32 = arith.constant 0 : i32
    %c0_i32_0 = arith.constant 0 : i32
    return %arg0, %c0_i32 : i32, i32
  }
  func.func @transform_5(%arg0: i32) -> (i32, i32) {
    %c0_i32 = arith.constant 0 : i32
    %c0_i32_0 = arith.constant 0 : i32
    return %c0_i32, %arg0 : i32, i32
  }
}

</mosaic_0001>

<llo_original>
// kernel: tpu_custom_call.1
$region0: #{tpu_custom_call.1}
  #allocation0 [shape = 'u32[]', space=smem, size = 0x4, offset = 0x4, fixed_abs, tag = 'smem constant byte address 0x4 - core index']
  #allocation1 [shape = 'u32[144,128]{1,0:T(1,128)}', space=vmem, size = 0x12000, scoped, tag = 'internal scratch']
  %s0 = inlined_call_operand.vmem [shape: f32[8,32], index: 0, kind: input, shape index: {}]
  %s1 = inlined_call_operand.vmem [shape: f32[8,1], index: 1, kind: input, shape index: {}]
  %s2 = inlined_call_operand.vmem [shape: f32[2,8], index: 2, kind: input, shape index: {}]
  %s3 = inlined_call_operand.vmem [shape: f32[2,1], index: 3, kind: input, shape index: {}]
  %s4 = inlined_call_operand.vmem [shape: f32[200,32], index: 4, kind: input, shape index: {}]
  %s5 = inlined_call_operand.hbm [shape: f32[2,200], index: 5, kind: output, shape index: {}]
  %s6 = sld [smem:[#allocation0]]
  $region53: #{tpu_custom_call.1} parent=0
    _
  %s8 = ssub.s32 1, %s6
  %s9 = scalar_select 0, %s8, %s6
  $region1: #{tpu_custom_call.1} parent=0
    #allocation2 [shape = 'u8[2048]{0}', space=vmem, size = 0x800, scoped, tag = 'output window, operand 0']
    #allocation3 [shape = 's32[2]{0}', space=sflag, size = 0x8, scoped, tag = 'scoped memory for tpu_custom_call.1']
    %10 = vsyncpa [#allocation3], 0
    %s11 = scalar_lea.sflag [#allocation3], 1
    %12 = vsyncpa %s11, 0
    loop: start=0, step=1, limit=4
    $region2: #{tpu_custom_call.1} parent=1 // loop_pre_header
      _
    $region3: #{tpu_custom_call.1} parent=1 // loop_header
      %s14 = sphi 0, %s18
      %p15 = scmp.ge.s32.totalorder %s14, 4
      %s22 = sphi 0, %s22
      %s24 = sphi 0, %s22
      %s25 = sphi 0, %s24
      %s39 = sphi 0, %s25
      %s43 = sphi 0, %s43
      %s45 = sphi 0, %s43
      %s46 = sphi 0, %s45
      %s60 = sphi 0, %s46
      %s64 = sphi 0, %s64
      %s66 = sphi 0, %s64
      %s67 = sphi 0, %s66
      %s81 = sphi 0, %s67
      %s85 = sphi 0, %s85
      %s87 = sphi 0, %s85
      %s88 = sphi 0, %s87
      %s102 = sphi 0, %s88
      %s108 = sphi 0, %s110
      %s111 = sphi 0, %s108
      %s112 = sphi 0, %s111
      %s128 = sphi 0, %s112
      %s134 = sphi 0, %s136
      %s137 = sphi 0, %s134
      %s138 = sphi 0, %s137
      %s154 = sphi 0, %s138
    $region4: #{tpu_custom_call.1} parent=1 // loop_header_branch
      %17 = sbr.rel (%p15) target = $region8
    $region5: #{tpu_custom_call.1} parent=1 // loop_body
      %s19 = ssub.s32 %s14, 1
      %s20 = ssub.s32 %s14, 2
      %s21 = sadd.s32 %s14, 1
      %s23 = sadd.s32 %s22, 1
      %p26 = scmp.eq.s32.totalorder %s14, 1
      %p27 = scmp.ne.s32.totalorder %s22, %s24
      %p28 = scmp.eq.s32.totalorder %s14, 0
      %p29 = por %p27, %p28
      %p30 = scmp.ne.s32.totalorder %s22, %s24
      %p31 = scmp.eq.s32.totalorder %s19, 1
      %p32 = por %p30, %p31
      %p33 = scmp.ne.s32.totalorder %s24, %s25
      %p34 = scmp.eq.s32.totalorder %s19, 0
      %p35 = por %p33, %p34
      %p36 = scmp.ne.s32.totalorder %s24, %s25
      %p37 = scmp.eq.s32.totalorder %s20, 1
      %p38 = por %p36, %p37
      %p40 = scmp.ne.s32.totalorder %s25, %s39
      %p41 = scmp.eq.s32.totalorder %s20, 0
      %p42 = por %p40, %p41
      %s44 = sadd.s32 %s43, 1
      %p47 = scmp.eq.s32.totalorder %s14, 1
      %p48 = scmp.ne.s32.totalorder %s43, %s45
      %p49 = scmp.eq.s32.totalorder %s14, 0
      %p50 = por %p48, %p49
      %p51 = scmp.ne.s32.totalorder %s43, %s45
      %p52 = scmp.eq.s32.totalorder %s19, 1
      %p53 = por %p51, %p52
      %p54 = scmp.ne.s32.totalorder %s45, %s46
      %p55 = scmp.eq.s32.totalorder %s19, 0
      %p56 = por %p54, %p55
      %p57 = scmp.ne.s32.totalorder %s45, %s46
      %p58 = scmp.eq.s32.totalorder %s20, 1
      %p59 = por %p57, %p58
      %p61 = scmp.ne.s32.totalorder %s46, %s60
      %p62 = scmp.eq.s32.totalorder %s20, 0
      %p63 = por %p61, %p62
      %s65 = sadd.s32 %s64, 1
      %p68 = scmp.eq.s32.totalorder %s14, 1
      %p69 = scmp.ne.s32.totalorder %s64, %s66
      %p70 = scmp.eq.s32.totalorder %s14, 0
      %p71 = por %p69, %p70
      %p72 = scmp.ne.s32.totalorder %s64, %s66
      %p73 = scmp.eq.s32.totalorder %s19, 1
      %p74 = por %p72, %p73
      %p75 = scmp.ne.s32.totalorder %s66, %s67
      %p76 = scmp.eq.s32.totalorder %s19, 0
      %p77 = por %p75, %p76
      %p78 = scmp.ne.s32.totalorder %s66, %s67
      %p79 = scmp.eq.s32.totalorder %s20, 1
      %p80 = por %p78, %p79
      %p82 = scmp.ne.s32.totalorder %s67, %s81
      %p83 = scmp.eq.s32.totalorder %s20, 0
      %p84 = por %p82, %p83
      %s86 = sadd.s32 %s85, 1
      %p89 = scmp.eq.s32.totalorder %s14, 1
      %p90 = scmp.ne.s32.totalorder %s85, %s87
      %p91 = scmp.eq.s32.totalorder %s14, 0
      %p92 = por %p90, %p91
      %p93 = scmp.ne.s32.totalorder %s85, %s87
      %p94 = scmp.eq.s32.totalorder %s19, 1
      %p95 = por %p93, %p94
      %p96 = scmp.ne.s32.totalorder %s87, %s88
      %p97 = scmp.eq.s32.totalorder %s19, 0
      %p98 = por %p96, %p97
      %p99 = scmp.ne.s32.totalorder %s87, %s88
      %p100 = scmp.eq.s32.totalorder %s20, 1
      %p101 = por %p99, %p100
      %p103 = scmp.ne.s32.totalorder %s88, %s102
      %p104 = scmp.eq.s32.totalorder %s20, 0
      %p105 = por %p103, %p104
      %s106 = ssub.s32 %s14, %s21
      %p107 = scmp.eq.s32.totalorder %s106, 0
      %s109 = sadd.s32 %s108, 1
      %s110 = scalar_select %p107, %s108, %s109
      %p113 = pneg %p107
      %p114 = scmp.eq.s32.totalorder %s14, 1
      %p115 = por %p113, %p114
      %p116 = scmp.ne.s32.totalorder %s108, %s111
      %p117 = scmp.eq.s32.totalorder %s14, 0
      %p118 = por %p116, %p117
      %p119 = scmp.ne.s32.totalorder %s108, %s111
      %p120 = scmp.eq.s32.totalorder %s19, 1
      %p121 = por %p119, %p120
      %p122 = scmp.ne.s32.totalorder %s111, %s112
      %p123 = scmp.eq.s32.totalorder %s19, 0
      %p124 = por %p122, %p123
      %p125 = scmp.ne.s32.totalorder %s111, %s112
      %p126 = scmp.eq.s32.totalorder %s20, 1
      %p127 = por %p125, %p126
      %p129 = scmp.ne.s32.totalorder %s112, %s128
      %p130 = scmp.eq.s32.totalorder %s20, 0
      %p131 = por %p129, %p130
      %s132 = ssub.s32 %s14, %s21
      %p133 = scmp.eq.s32.totalorder %s132, 0
      %s135 = sadd.s32 %s134, 1
      %s136 = scalar_select %p133, %s134, %s135
      %p139 = pneg %p133
      %p140 = scmp.eq.s32.totalorder %s14, 1
      %p141 = por %p139, %p140
      %p142 = scmp.ne.s32.totalorder %s134, %s137
      %p143 = scmp.eq.s32.totalorder %s14, 0
      %p144 = por %p142, %p143
      %p145 = scmp.ne.s32.totalorder %s134, %s137
      %p146 = scmp.eq.s32.totalorder %s19, 1
      %p147 = por %p145, %p146
      %p148 = scmp.ne.s32.totalorder %s137, %s138
      %p149 = scmp.eq.s32.totalorder %s19, 0
      %p150 = por %p148, %p149
      %p151 = scmp.ne.s32.totalorder %s137, %s138
      %p152 = scmp.eq.s32.totalorder %s20, 1
      %p153 = por %p151, %p152
      %p155 = scmp.ne.s32.totalorder %s138, %s154
      %p156 = scmp.eq.s32.totalorder %s20, 0
      %p157 = por %p155, %p156
      %p158 = scmp.le.s32.totalorder 1, %s14
      %p159 = scmp.lt.s32.totalorder %s14, 3
      %p160 = pnand %p158, %p159
      %p161 = pneg %p160
      // Predicated region
      $region9: #{tpu_custom_call.1} parent=5 // pred_check
        _
      $region10: #{tpu_custom_call.1} parent=5 // pred_check_branch
        %163 = sbr.rel (%p160) target = $region12
      $region11: #{tpu_custom_call.1} parent=5 // pred_region
        %s164 = ssub.s32 %s14, 1
        // Predicated region
        $region13: #{tpu_custom_call.1} parent=11 // pred_check
          %p165 = pneg %p35
        $region14: #{tpu_custom_call.1} parent=11 // pred_check_branch
          %167 = sbr.rel (%p165) target = $region16
        $region15: #{tpu_custom_call.1} parent=11 // pred_region
          _
        $region16: #{tpu_custom_call.1} parent=11 // pred_fallthru
          _
        // Predicated region
        $region17: #{tpu_custom_call.1} parent=11 // pred_check
          %p168 = pneg %p56
        $region18: #{tpu_custom_call.1} parent=11 // pred_check_branch
          %170 = sbr.rel (%p168) target = $region20
        $region19: #{tpu_custom_call.1} parent=11 // pred_region
          _
        $region20: #{tpu_custom_call.1} parent=11 // pred_fallthru
          _
        // Predicated region
        $region21: #{tpu_custom_call.1} parent=11 // pred_check
          %p171 = pneg %p77
        $region22: #{tpu_custom_call.1} parent=11 // pred_check_branch
          %173 = sbr.rel (%p171) target = $region24
        $region23: #{tpu_custom_call.1} parent=11 // pred_region
          _
        $region24: #{tpu_custom_call.1} parent=11 // pred_fallthru
          _
        // Predicated region
        $region25: #{tpu_custom_call.1} parent=11 // pred_check
          %p174 = pneg %p98
        $region26: #{tpu_custom_call.1} parent=11 // pred_check_branch
          %176 = sbr.rel (%p174) target = $region28
        $region27: #{tpu_custom_call.1} parent=11 // pred_region
          _
        $region28: #{tpu_custom_call.1} parent=11 // pred_fallthru
          _
      $region12: #{tpu_custom_call.1} parent=5 // pred_fallthru
        _
      %p177 = scmp.lt.s32.totalorder %s14, 2
      // Predicated region
      $region29: #{tpu_custom_call.1} parent=5 // pred_check
        %p178 = pneg %p177
      $region30: #{tpu_custom_call.1} parent=5 // pred_check_branch
        %180 = sbr.rel (%p178) target = $region32
      $region31: #{tpu_custom_call.1} parent=5 // pred_region
        // Predicated region
        $region33: #{tpu_custom_call.1} parent=31 // pred_check
          %p181 = pneg %p118
        $region34: #{tpu_custom_call.1} parent=31 // pred_check_branch
          %183 = sbr.rel (%p181) target = $region36
        $region35: #{tpu_custom_call.1} parent=31 // pred_region
          %s184 = smul.u32 16, %s14
          %s185 = ssub.s32 25, %s184
          %p186 = scmp.lt.s32.totalorder %s185, 16
          %s187 = scalar_select %p186, %s185, 16
          %s188 = smul.u32 128, %s187
          %p189 = scmp.lt.s32.totalorder %s184, 24
          %s190 = scalar_select %p189, %s184, 24
          %s191 = smul.addr %s190, 8
          %s192 = scalar_lea.vmem %s4, %s191
          %s193 = smul.u32 16, %s14
          %s194 = ssub.s32 25, %s193
          %p195 = scmp.lt.s32.totalorder %s194, 16
          %s196 = scalar_select %p195, %s194, 16
          %s197 = smul.u32 128, %s196
        $region36: #{tpu_custom_call.1} parent=31 // pred_fallthru
          _
      $region32: #{tpu_custom_call.1} parent=5 // pred_fallthru
        _
      %p198 = scmp.le.s32.totalorder 1, %s14
      %p199 = scmp.lt.s32.totalorder %s14, 3
      %p200 = pnand %p198, %p199
      %p201 = pneg %p200
      // Predicated region
      $region37: #{tpu_custom_call.1} parent=5 // pred_check
        _
      $region38: #{tpu_custom_call.1} parent=5 // pred_check_branch
        %203 = sbr.rel (%p200) target = $region40
      $region39: #{tpu_custom_call.1} parent=5 // pred_region
        %s204 = ssub.s32 %s14, 1
        %p205 = pneg %p35
        %p206 = pneg %p32
        %p207 = pneg %p56
        %p208 = pneg %p53
        %p209 = pneg %p77
        %p210 = pneg %p74
        %p211 = pneg %p98
        %p212 = pneg %p95
        %s213 = smul.u32 16, %s19
        %s214 = ssub.s32 25, %s213
        %p215 = scmp.lt.s32.totalorder %s214, 16
        %s216 = scalar_select %p215, %s214, 16
        %s217 = smul.u32 128, %s216
        %p218 = scmp.lt.s32.totalorder %s213, 24
        %s219 = scalar_select %p218, %s213, 24
        %s220 = smul.addr %s219, 8
        %s221 = scalar_lea.vmem %s4, %s220
        %p222 = pneg %p124
        %p223 = pneg %p121
        %p224 = pneg %p150
        %p225 = pneg %p147
        %s226 = sand.u32 %s137, 1
        %s227 = scalar_lea.sflag [#allocation3], %s226
        %s228 = sand.u32 %s137, 1
        %s229 = smul.addr %s228, 2
        %s230 = scalar_lea.vmem [#allocation2], %s229
        %s231 = smul.u32 16, %s19
        %s232 = ssub.s32 25, %s231
        %p233 = scmp.lt.s32.totalorder %s232, 16
        %s234 = scalar_select %p233, %s232, 16
        %s235 = smul.u32 128, %s234
        %p236 = scmp.lt.s32.totalorder %s231, 24
        %s237 = scalar_select %p236, %s231, 24
        %s238 = smul.addr %s237, 8
        %s239 = scalar_lea.vmem %s4, %s238
        %s240 = smul.u32 16, %s19
        %s241 = ssub.s32 25, %s240
        %p242 = scmp.lt.s32.totalorder %s241, 16
        %s243 = scalar_select %p242, %s241, 16
        %s244 = smul.u32 128, %s243
        %v245 = vld [vmem:[%s239] sm:$0xff]
        %v246 = vld [vmem:[%s239 + $0x8] sm:$0xff]
        %v247 = vld [vmem:[%s239 + $0x10] sm:$0xff]
        %v248 = vld [vmem:[%s239 + $0x18] sm:$0xff]
        %v249 = vld [vmem:[%s239 + $0x20] sm:$0xff]
        %v250 = vld [vmem:[%s239 + $0x28] sm:$0xff]
        %v251 = vld [vmem:[%s239 + $0x30] sm:$0xff]
        %v252 = vld [vmem:[%s239 + $0x38] sm:$0xff]
        %v253 = vld [vmem:[%s239 + $0x40] sm:$0xff]
        %v254 = vld [vmem:[%s239 + $0x48] sm:$0xff]
        %v255 = vld [vmem:[%s239 + $0x50] sm:$0xff]
        %v256 = vld [vmem:[%s239 + $0x58] sm:$0xff]
        %v257 = vld [vmem:[%s239 + $0x60] sm:$0xff]
        %v258 = vld [vmem:[%s239 + $0x68] sm:$0xff]
        %v259 = vld [vmem:[%s239 + $0x70] sm:$0xff]
        %v260 = vld [vmem:[%s239 + $0x78] sm:$0xff]
        %v261 = vld [vmem:[%s0] sm:$0xff]
        %v262 = vld [vmem:[%s1] sm:$0xff]
        %264 = vset.pattern.permute.xlu0 0
        %265 = vperm.xlu0 %264, %v262
        %v266 = vpop.permute.xlu0 %265
        %vm268 = vcmask 261120
        %v270 = vsel %vm268, %v261, 0
        %v273 = vsel %vm268, %v245, 0
        %v276 = vsel %vm268, %v246, 0
        %v279 = vsel %vm268, %v247, 0
        %v282 = vsel %vm268, %v248, 0
        %v285 = vsel %vm268, %v249, 0
        %v288 = vsel %vm268, %v250, 0
        %v291 = vsel %vm268, %v251, 0
        %v294 = vsel %vm268, %v252, 0
        %v297 = vsel %vm268, %v253, 0
        %v300 = vsel %vm268, %v254, 0
        %v303 = vsel %vm268, %v255, 0
        %v306 = vsel %vm268, %v256, 0
        %v309 = vsel %vm268, %v257, 0
        %v312 = vsel %vm268, %v258, 0
        %v315 = vsel %vm268, %v259, 0
        %v318 = vsel %vm268, %v260, 0
        %320 = vmatprep.subr.mxu0 0.0
        %v321 = vand.u32 %v273, 4294901760
        %322 = vmatpush1.xpose.msra.mxu0 %v321
        %323 = vmatprep.subr.mxu0 0.0
        %v324 = vand.u32 %v276, 4294901760
        %325 = vmatpush1.xpose.msra.mxu0 %v324
        %326 = vmatprep.subr.mxu0 0.0
        %v327 = vand.u32 %v279, 4294901760
        %328 = vmatpush1.xpose.msra.mxu0 %v327
        %329 = vmatprep.subr.mxu0 0.0
        %v330 = vand.u32 %v282, 4294901760
        %331 = vmatpush1.xpose.msra.mxu0 %v330
        %332 = vmatprep.subr.mxu0 0.0
        %v333 = vand.u32 %v285, 4294901760
        %334 = vmatpush1.xpose.msra.mxu0 %v333
        %335 = vmatprep.subr.mxu0 0.0
        %v336 = vand.u32 %v288, 4294901760
        %337 = vmatpush1.xpose.msra.mxu0 %v336
        %338 = vmatprep.subr.mxu0 0.0
        %v339 = vand.u32 %v291, 4294901760
        %340 = vmatpush1.xpose.msra.mxu0 %v339
        %341 = vmatprep.subr.mxu0 0.0
        %v342 = vand.u32 %v294, 4294901760
        %343 = vmatpush1.xpose.msra.mxu0 %v342
        %344 = vmatprep.subr.mxu0 0.0
        %v345 = vand.u32 %v297, 4294901760
        %346 = vmatpush1.xpose.msra.mxu0 %v345
        %347 = vmatprep.subr.mxu0 0.0
        %v348 = vand.u32 %v300, 4294901760
        %349 = vmatpush1.xpose.msra.mxu0 %v348
        %350 = vmatprep.subr.mxu0 0.0
        %v351 = vand.u32 %v303, 4294901760
        %352 = vmatpush1.xpose.msra.mxu0 %v351
        %353 = vmatprep.subr.mxu0 0.0
        %v354 = vand.u32 %v306, 4294901760
        %355 = vmatpush1.xpose.msra.mxu0 %v354
        %356 = vmatprep.subr.mxu0 0.0
        %v357 = vand.u32 %v309, 4294901760
        %358 = vmatpush1.xpose.msra.mxu0 %v357
        %359 = vmatprep.subr.mxu0 0.0
        %v360 = vand.u32 %v312, 4294901760
        %361 = vmatpush1.xpose.msra.mxu0 %v360
        %362 = vmatprep.subr.mxu0 0.0
        %v363 = vand.u32 %v315, 4294901760
        %364 = vmatpush1.xpose.msra.mxu0 %v363
        %365 = vmatprep.subr.mxu0 0.0
        %v366 = vand.u32 %v318, 4294901760
        %367 = vmatpush1.xpose.msra.mxu0 %v366
        %368 = vmatprep.subr.mxu0 0.0
        %369 = vmatpush1.xpose.msra.mxu0 0.0
        %370 = vmatprep.subr.mxu0 0.0
        %371 = vmatpush1.xpose.msra.mxu0 0.0
        %372 = vmatprep.subr.mxu0 0.0
        %373 = vmatpush1.xpose.msra.mxu0 0.0
        %374 = vmatprep.subr.mxu0 0.0
        %375 = vmatpush1.xpose.msra.mxu0 0.0
        %376 = vmatprep.subr.mxu0 0.0
        %377 = vmatpush1.xpose.msra.mxu0 0.0
        %378 = vmatprep.subr.mxu0 0.0
        %379 = vmatpush1.xpose.msra.mxu0 0.0
        %380 = vmatprep.subr.mxu0 0.0
        %381 = vmatpush1.xpose.msra.mxu0 0.0
        %382 = vmatprep.subr.mxu0 0.0
        %383 = vmatpush1.xpose.msra.mxu0 0.0
        %384 = vmatprep.subr.mxu0 0.0
        %385 = vmatpush1.xpose.msra.mxu0 0.0
        %386 = vmatprep.subr.mxu0 0.0
        %387 = vmatpush1.xpose.msra.mxu0 0.0
        %388 = vmatprep.subr.mxu0 0.0
        %389 = vmatpush1.xpose.msra.mxu0 0.0
        %390 = vmatprep.subr.mxu0 0.0
        %391 = vmatpush1.xpose.msra.mxu0 0.0
        %392 = vmatprep.subr.mxu0 0.0
        %393 = vmatpush1.xpose.msra.mxu0 0.0
        %394 = vmatprep.subr.mxu0 0.0
        %395 = vmatpush1.xpose.msra.mxu0 0.0
        %396 = vmatprep.subr.mxu0 0.0
        %397 = vmatpush1.xpose.msra.mxu0 0.0
        %398 = vmatprep.subr.mxu0 0.0
        %399 = vmatpush1.xpose.msra.mxu0 0.0
        %400 = vmatprep.mubr.f32.mxu0 0.0
        %v401 = vand.u32 %v270, 4294901760
        %v402 = vsub.f32 %v270, %v401
        %v403 = vand.u32 %v402, 4294901760
        %v404 = vsub.f32 %v402, %v403
        %v405 = vand.u32 %v404, 4294901760
        %406 = vmatmul.mubr.f32.gmra.mrb[0].mxu0 %v405
        %v407 = vpop.f32.mrb[0].mxu0
        %v408 = vadd.f32 %v266, %v407
        %v409 = vpop.f32.mrb[0].mxu0
        %410 = vdwg.mxu0
        %411 = vmatprep.subr.mxu0 0.0
        %v412 = vand.u32 %v273, 4294901760
        %v413 = vsub.f32 %v273, %v412
        %v414 = vand.u32 %v413, 4294901760
        %v415 = vsub.f32 %v413, %v414
        %v416 = vand.u32 %v415, 4294901760
        %417 = vmatpush1.xpose.msra.mxu0 %v416
        %418 = vmatprep.subr.mxu0 0.0
        %v419 = vand.u32 %v276, 4294901760
        %v420 = vsub.f32 %v276, %v419
        %v421 = vand.u32 %v420, 4294901760
        %v422 = vsub.f32 %v420, %v421
        %v423 = vand.u32 %v422, 4294901760
        %424 = vmatpush1.xpose.msra.mxu0 %v423
        %425 = vmatprep.subr.mxu0 0.0
        %v426 = vand.u32 %v279, 4294901760
        %v427 = vsub.f32 %v279, %v426
        %v428 = vand.u32 %v427, 4294901760
        %v429 = vsub.f32 %v427, %v428
        %v430 = vand.u32 %v429, 4294901760
        %431 = vmatpush1.xpose.msra.mxu0 %v430
        %432 = vmatprep.subr.mxu0 0.0
        %v433 = vand.u32 %v282, 4294901760
        %v434 = vsub.f32 %v282, %v433
        %v435 = vand.u32 %v434, 4294901760
        %v436 = vsub.f32 %v434, %v435
        %v437 = vand.u32 %v436, 4294901760
        %438 = vmatpush1.xpose.msra.mxu0 %v437
        %439 = vmatprep.subr.mxu0 0.0
        %v440 = vand.u32 %v285, 4294901760
        %v441 = vsub.f32 %v285, %v440
        %v442 = vand.u32 %v441, 4294901760
        %v443 = vsub.f32 %v441, %v442
        %v444 = vand.u32 %v443, 4294901760
        %445 = vmatpush1.xpose.msra.mxu0 %v444
        %446 = vmatprep.subr.mxu0 0.0
        %v447 = vand.u32 %v288, 4294901760
        %v448 = vsub.f32 %v288, %v447
        %v449 = vand.u32 %v448, 4294901760
        %v450 = vsub.f32 %v448, %v449
        %v451 = vand.u32 %v450, 4294901760
        %452 = vmatpush1.xpose.msra.mxu0 %v451
        %453 = vmatprep.subr.mxu0 0.0
        %v454 = vand.u32 %v291, 4294901760
        %v455 = vsub.f32 %v291, %v454
        %v456 = vand.u32 %v455, 4294901760
        %v457 = vsub.f32 %v455, %v456
        %v458 = vand.u32 %v457, 4294901760
        %459 = vmatpush1.xpose.msra.mxu0 %v458
        %460 = vmatprep.subr.mxu0 0.0
        %v461 = vand.u32 %v294, 4294901760
        %v462 = vsub.f32 %v294, %v461
        %v463 = vand.u32 %v462, 4294901760
        %v464 = vsub.f32 %v462, %v463
        %v465 = vand.u32 %v464, 4294901760
        %466 = vmatpush1.xpose.msra.mxu0 %v465
        %467 = vmatprep.subr.mxu0 0.0
        %v468 = vand.u32 %v297, 4294901760
        %v469 = vsub.f32 %v297, %v468
        %v470 = vand.u32 %v469, 4294901760
        %v471 = vsub.f32 %v469, %v470
        %v472 = vand.u32 %v471, 4294901760
        %473 = vmatpush1.xpose.msra.mxu0 %v472
        %474 = vmatprep.subr.mxu0 0.0
        %v475 = vand.u32 %v300, 4294901760
        %v476 = vsub.f32 %v300, %v475
        %v477 = vand.u32 %v476, 4294901760
        %v478 = vsub.f32 %v476, %v477
        %v479 = vand.u32 %v478, 4294901760
        %480 = vmatpush1.xpose.msra.mxu0 %v479
        %481 = vmatprep.subr.mxu0 0.0
        %v482 = vand.u32 %v303, 4294901760
        %v483 = vsub.f32 %v303, %v482
        %v484 = vand.u32 %v483, 4294901760
        %v485 = vsub.f32 %v483, %v484
        %v486 = vand.u32 %v485, 4294901760
        %487 = vmatpush1.xpose.msra.mxu0 %v486
        %488 = vmatprep.subr.mxu0 0.0
        %v489 = vand.u32 %v306, 4294901760
        %v490 = vsub.f32 %v306, %v489
        %v491 = vand.u32 %v490, 4294901760
        %v492 = vsub.f32 %v490, %v491
        %v493 = vand.u32 %v492, 4294901760
        %494 = vmatpush1.xpose.msra.mxu0 %v493
        %495 = vmatprep.subr.mxu0 0.0
        %v496 = vand.u32 %v309, 4294901760
        %v497 = vsub.f32 %v309, %v496
        %v498 = vand.u32 %v497, 4294901760
        %v499 = vsub.f32 %v497, %v498
        %v500 = vand.u32 %v499, 4294901760
        %501 = vmatpush1.xpose.msra.mxu0 %v500
        %502 = vmatprep.subr.mxu0 0.0
        %v503 = vand.u32 %v312, 4294901760
        %v504 = vsub.f32 %v312, %v503
        %v505 = vand.u32 %v504, 4294901760
        %v506 = vsub.f32 %v504, %v505
        %v507 = vand.u32 %v506, 4294901760
        %508 = vmatpush1.xpose.msra.mxu0 %v507
        %509 = vmatprep.subr.mxu0 0.0
        %v510 = vand.u32 %v315, 4294901760
        %v511 = vsub.f32 %v315, %v510
        %v512 = vand.u32 %v511, 4294901760
        %v513 = vsub.f32 %v511, %v512
        %v514 = vand.u32 %v513, 4294901760
        %515 = vmatpush1.xpose.msra.mxu0 %v514
        %516 = vmatprep.subr.mxu0 0.0
        %v517 = vand.u32 %v318, 4294901760
        %v518 = vsub.f32 %v318, %v517
        %v519 = vand.u32 %v518, 4294901760
        %v520 = vsub.f32 %v518, %v519
        %v521 = vand.u32 %v520, 4294901760
        %522 = vmatpush1.xpose.msra.mxu0 %v521
        %523 = vmatprep.subr.mxu0 0.0
        %524 = vmatpush1.xpose.msra.mxu0 0.0
        %525 = vmatprep.subr.mxu0 0.0
        %526 = vmatpush1.xpose.msra.mxu0 0.0
        %527 = vmatprep.subr.mxu0 0.0
        %528 = vmatpush1.xpose.msra.mxu0 0.0
        %529 = vmatprep.subr.mxu0 0.0
        %530 = vmatpush1.xpose.msra.mxu0 0.0
        %531 = vmatprep.subr.mxu0 0.0
        %532 = vmatpush1.xpose.msra.mxu0 0.0
        %533 = vmatprep.subr.mxu0 0.0
        %534 = vmatpush1.xpose.msra.mxu0 0.0
        %535 = vmatprep.subr.mxu0 0.0
        %536 = vmatpush1.xpose.msra.mxu0 0.0
        %537 = vmatprep.subr.mxu0 0.0
        %538 = vmatpush1.xpose.msra.mxu0 0.0
        %539 = vmatprep.subr.mxu0 0.0
        %540 = vmatpush1.xpose.msra.mxu0 0.0
        %541 = vmatprep.subr.mxu0 0.0
        %542 = vmatpush1.xpose.msra.mxu0 0.0
        %543 = vmatprep.subr.mxu0 0.0
        %544 = vmatpush1.xpose.msra.mxu0 0.0
        %545 = vmatprep.subr.mxu0 0.0
        %546 = vmatpush1.xpose.msra.mxu0 0.0
        %547 = vmatprep.subr.mxu0 0.0
        %548 = vmatpush1.xpose.msra.mxu0 0.0
        %549 = vmatprep.subr.mxu0 0.0
        %550 = vmatpush1.xpose.msra.mxu0 0.0
        %551 = vmatprep.subr.mxu0 0.0
        %552 = vmatpush1.xpose.msra.mxu0 0.0
        %553 = vmatprep.subr.mxu0 0.0
        %554 = vmatpush1.xpose.msra.mxu0 0.0
        %555 = vmatprep.mubr.f32.mxu0 0.0
        %v556 = vand.u32 %v270, 4294901760
        %557 = vmatmul.mubr.f32.gmra.mrb[0].mxu0 %v556
        %v558 = vpop.f32.mrb[0].mxu0
        %v559 = vadd.f32 %v408, %v558
        %v560 = vpop.f32.mrb[0].mxu0
        %561 = vdwg.mxu0
        %562 = vmatprep.subr.mxu0 0.0
        %v563 = vand.u32 %v273, 4294901760
        %v564 = vsub.f32 %v273, %v563
        %565 = vmatpush1.xpose.msra.mxu0 %v564
        %566 = vmatprep.subr.mxu0 0.0
        %v567 = vand.u32 %v276, 4294901760
        %v568 = vsub.f32 %v276, %v567
        %569 = vmatpush1.xpose.msra.mxu0 %v568
        %570 = vmatprep.subr.mxu0 0.0
        %v571 = vand.u32 %v279, 4294901760
        %v572 = vsub.f32 %v279, %v571
        %573 = vmatpush1.xpose.msra.mxu0 %v572
        %574 = vmatprep.subr.mxu0 0.0
        %v575 = vand.u32 %v282, 4294901760
        %v576 = vsub.f32 %v282, %v575
        %577 = vmatpush1.xpose.msra.mxu0 %v576
        %578 = vmatprep.subr.mxu0 0.0
        %v579 = vand.u32 %v285, 4294901760
        %v580 = vsub.f32 %v285, %v579
        %581 = vmatpush1.xpose.msra.mxu0 %v580
        %582 = vmatprep.subr.mxu0 0.0
        %v583 = vand.u32 %v288, 4294901760
        %v584 = vsub.f32 %v288, %v583
        %585 = vmatpush1.xpose.msra.mxu0 %v584
        %586 = vmatprep.subr.mxu0 0.0
        %v587 = vand.u32 %v291, 4294901760
        %v588 = vsub.f32 %v291, %v587
        %589 = vmatpush1.xpose.msra.mxu0 %v588
        %590 = vmatprep.subr.mxu0 0.0
        %v591 = vand.u32 %v294, 4294901760
        %v592 = vsub.f32 %v294, %v591
        %593 = vmatpush1.xpose.msra.mxu0 %v592
        %594 = vmatprep.subr.mxu0 0.0
        %v595 = vand.u32 %v297, 4294901760
        %v596 = vsub.f32 %v297, %v595
        %597 = vmatpush1.xpose.msra.mxu0 %v596
        %598 = vmatprep.subr.mxu0 0.0
        %v599 = vand.u32 %v300, 4294901760
        %v600 = vsub.f32 %v300, %v599
        %601 = vmatpush1.xpose.msra.mxu0 %v600
        %602 = vmatprep.subr.mxu0 0.0
        %v603 = vand.u32 %v303, 4294901760
        %v604 = vsub.f32 %v303, %v603
        %605 = vmatpush1.xpose.msra.mxu0 %v604
        %606 = vmatprep.subr.mxu0 0.0
        %v607 = vand.u32 %v306, 4294901760
        %v608 = vsub.f32 %v306, %v607
        %609 = vmatpush1.xpose.msra.mxu0 %v608
        %610 = vmatprep.subr.mxu0 0.0
        %v611 = vand.u32 %v309, 4294901760
        %v612 = vsub.f32 %v309, %v611
        %613 = vmatpush1.xpose.msra.mxu0 %v612
        %614 = vmatprep.subr.mxu0 0.0
        %v615 = vand.u32 %v312, 4294901760
        %v616 = vsub.f32 %v312, %v615
        %617 = vmatpush1.xpose.msra.mxu0 %v616
        %618 = vmatprep.subr.mxu0 0.0
        %v619 = vand.u32 %v315, 4294901760
        %v620 = vsub.f32 %v315, %v619
        %621 = vmatpush1.xpose.msra.mxu0 %v620
        %622 = vmatprep.subr.mxu0 0.0
        %v623 = vand.u32 %v318, 4294901760
        %v624 = vsub.f32 %v318, %v623
        %625 = vmatpush1.xpose.msra.mxu0 %v624
        %626 = vmatprep.subr.mxu0 0.0
        %627 = vmatpush1.xpose.msra.mxu0 0.0
        %628 = vmatprep.subr.mxu0 0.0
        %629 = vmatpush1.xpose.msra.mxu0 0.0
        %630 = vmatprep.subr.mxu0 0.0
        %631 = vmatpush1.xpose.msra.mxu0 0.0
        %632 = vmatprep.subr.mxu0 0.0
        %633 = vmatpush1.xpose.msra.mxu0 0.0
        %634 = vmatprep.subr.mxu0 0.0
        %635 = vmatpush1.xpose.msra.mxu0 0.0
        %636 = vmatprep.subr.mxu0 0.0
        %637 = vmatpush1.xpose.msra.mxu0 0.0
        %638 = vmatprep.subr.mxu0 0.0
        %639 = vmatpush1.xpose.msra.mxu0 0.0
        %640 = vmatprep.subr.mxu0 0.0
        %641 = vmatpush1.xpose.msra.mxu0 0.0
        %642 = vmatprep.subr.mxu0 0.0
        %643 = vmatpush1.xpose.msra.mxu0 0.0
        %644 = vmatprep.subr.mxu0 0.0
        %645 = vmatpush1.xpose.msra.mxu0 0.0
        %646 = vmatprep.subr.mxu0 0.0
        %647 = vmatpush1.xpose.msra.mxu0 0.0
        %648 = vmatprep.subr.mxu0 0.0
        %649 = vmatpush1.xpose.msra.mxu0 0.0
        %650 = vmatprep.subr.mxu0 0.0
        %651 = vmatpush1.xpose.msra.mxu0 0.0
        %652 = vmatprep.subr.mxu0 0.0
        %653 = vmatpush1.xpose.msra.mxu0 0.0
        %654 = vmatprep.subr.mxu0 0.0
        %655 = vmatpush1.xpose.msra.mxu0 0.0
        %656 = vmatprep.subr.mxu0 0.0
        %657 = vmatpush1.xpose.msra.mxu0 0.0
        %658 = vmatprep.mubr.f32.mxu0 0.0
        %v659 = vand.u32 %v270, 4294901760
        %v660 = vsub.f32 %v270, %v659
        %661 = vmatmul.mubr.f32.gmra.mrb[0].mxu0 %v660
        %v662 = vpop.f32.mrb[0].mxu0
        %v663 = vadd.f32 %v559, %v662
        %v664 = vpop.f32.mrb[0].mxu0
        %665 = vdwg.mxu0
        %666 = vmatprep.subr.mxu0 0.0
        %v667 = vand.u32 %v273, 4294901760
        %668 = vmatpush1.xpose.msra.mxu0 %v667
        %669 = vmatprep.subr.mxu0 0.0
        %v670 = vand.u32 %v276, 4294901760
        %671 = vmatpush1.xpose.msra.mxu0 %v670
        %672 = vmatprep.subr.mxu0 0.0
        %v673 = vand.u32 %v279, 4294901760
        %674 = vmatpush1.xpose.msra.mxu0 %v673
        %675 = vmatprep.subr.mxu0 0.0
        %v676 = vand.u32 %v282, 4294901760
        %677 = vmatpush1.xpose.msra.mxu0 %v676
        %678 = vmatprep.subr.mxu0 0.0
        %v679 = vand.u32 %v285, 4294901760
        %680 = vmatpush1.xpose.msra.mxu0 %v679
        %681 = vmatprep.subr.mxu0 0.0
        %v682 = vand.u32 %v288, 4294901760
        %683 = vmatpush1.xpose.msra.mxu0 %v682
        %684 = vmatprep.subr.mxu0 0.0
        %v685 = vand.u32 %v291, 4294901760
        %686 = vmatpush1.xpose.msra.mxu0 %v685
        %687 = vmatprep.subr.mxu0 0.0
        %v688 = vand.u32 %v294, 4294901760
        %689 = vmatpush1.xpose.msra.mxu0 %v688
        %690 = vmatprep.subr.mxu0 0.0
        %v691 = vand.u32 %v297, 4294901760
        %692 = vmatpush1.xpose.msra.mxu0 %v691
        %693 = vmatprep.subr.mxu0 0.0
        %v694 = vand.u32 %v300, 4294901760
        %695 = vmatpush1.xpose.msra.mxu0 %v694
        %696 = vmatprep.subr.mxu0 0.0
        %v697 = vand.u32 %v303, 4294901760
        %698 = vmatpush1.xpose.msra.mxu0 %v697
        %699 = vmatprep.subr.mxu0 0.0
        %v700 = vand.u32 %v306, 4294901760
        %701 = vmatpush1.xpose.msra.mxu0 %v700
        %702 = vmatprep.subr.mxu0 0.0
        %v703 = vand.u32 %v309, 4294901760
        %704 = vmatpush1.xpose.msra.mxu0 %v703
        %705 = vmatprep.subr.mxu0 0.0
        %v706 = vand.u32 %v312, 4294901760
        %707 = vmatpush1.xpose.msra.mxu0 %v706
        %708 = vmatprep.subr.mxu0 0.0
        %v709 = vand.u32 %v315, 4294901760
        %710 = vmatpush1.xpose.msra.mxu0 %v709
        %711 = vmatprep.subr.mxu0 0.0
        %v712 = vand.u32 %v318, 4294901760
        %713 = vmatpush1.xpose.msra.mxu0 %v712
        %714 = vmatprep.subr.mxu0 0.0
        %715 = vmatpush1.xpose.msra.mxu0 0.0
        %716 = vmatprep.subr.mxu0 0.0
        %717 = vmatpush1.xpose.msra.mxu0 0.0
        %718 = vmatprep.subr.mxu0 0.0
        %719 = vmatpush1.xpose.msra.mxu0 0.0
        %720 = vmatprep.subr.mxu0 0.0
        %721 = vmatpush1.xpose.msra.mxu0 0.0
        %722 = vmatprep.subr.mxu0 0.0
        %723 = vmatpush1.xpose.msra.mxu0 0.0
        %724 = vmatprep.subr.mxu0 0.0
        %725 = vmatpush1.xpose.msra.mxu0 0.0
        %726 = vmatprep.subr.mxu0 0.0
        %727 = vmatpush1.xpose.msra.mxu0 0.0
        %728 = vmatprep.subr.mxu0 0.0
        %729 = vmatpush1.xpose.msra.mxu0 0.0
        %730 = vmatprep.subr.mxu0 0.0
        %731 = vmatpush1.xpose.msra.mxu0 0.0
        %732 = vmatprep.subr.mxu0 0.0
        %733 = vmatpush1.xpose.msra.mxu0 0.0
        %734 = vmatprep.subr.mxu0 0.0
        %735 = vmatpush1.xpose.msra.mxu0 0.0
        %736 = vmatprep.subr.mxu0 0.0
        %737 = vmatpush1.xpose.msra.mxu0 0.0
        %738 = vmatprep.subr.mxu0 0.0
        %739 = vmatpush1.xpose.msra.mxu0 0.0
        %740 = vmatprep.subr.mxu0 0.0
        %741 = vmatpush1.xpose.msra.mxu0 0.0
        %742 = vmatprep.subr.mxu0 0.0
        %743 = vmatpush1.xpose.msra.mxu0 0.0
        %744 = vmatprep.subr.mxu0 0.0
        %745 = vmatpush1.xpose.msra.mxu0 0.0
        %746 = vmatprep.mubr.f32.mxu0 0.0
        %v747 = vand.u32 %v270, 4294901760
        %v748 = vsub.f32 %v270, %v747
        %v749 = vand.u32 %v748, 4294901760
        %750 = vmatmul.mubr.f32.gmra.mrb[0].mxu0 %v749
        %v751 = vpop.f32.mrb[0].mxu0
        %v752 = vadd.f32 %v663, %v751
        %v753 = vpop.f32.mrb[0].mxu0
        %754 = vdwg.mxu0
        %755 = vmatprep.subr.mxu0 0.0
        %v756 = vand.u32 %v273, 4294901760
        %v757 = vsub.f32 %v273, %v756
        %v758 = vand.u32 %v757, 4294901760
        %759 = vmatpush1.xpose.msra.mxu0 %v758
        %760 = vmatprep.subr.mxu0 0.0
        %v761 = vand.u32 %v276, 4294901760
        %v762 = vsub.f32 %v276, %v761
        %v763 = vand.u32 %v762, 4294901760
        %764 = vmatpush1.xpose.msra.mxu0 %v763
        %765 = vmatprep.subr.mxu0 0.0
        %v766 = vand.u32 %v279, 4294901760
        %v767 = vsub.f32 %v279, %v766
        %v768 = vand.u32 %v767, 4294901760
        %769 = vmatpush1.xpose.msra.mxu0 %v768
        %770 = vmatprep.subr.mxu0 0.0
        %v771 = vand.u32 %v282, 4294901760
        %v772 = vsub.f32 %v282, %v771
        %v773 = vand.u32 %v772, 4294901760
        %774 = vmatpush1.xpose.msra.mxu0 %v773
        %775 = vmatprep.subr.mxu0 0.0
        %v776 = vand.u32 %v285, 4294901760
        %v777 = vsub.f32 %v285, %v776
        %v778 = vand.u32 %v777, 4294901760
        %779 = vmatpush1.xpose.msra.mxu0 %v778
        %780 = vmatprep.subr.mxu0 0.0
        %v781 = vand.u32 %v288, 4294901760
        %v782 = vsub.f32 %v288, %v781
        %v783 = vand.u32 %v782, 4294901760
        %784 = vmatpush1.xpose.msra.mxu0 %v783
        %785 = vmatprep.subr.mxu0 0.0
        %v786 = vand.u32 %v291, 4294901760
        %v787 = vsub.f32 %v291, %v786
        %v788 = vand.u32 %v787, 4294901760
        %789 = vmatpush1.xpose.msra.mxu0 %v788
        %790 = vmatprep.subr.mxu0 0.0
        %v791 = vand.u32 %v294, 4294901760
        %v792 = vsub.f32 %v294, %v791
        %v793 = vand.u32 %v792, 4294901760
        %794 = vmatpush1.xpose.msra.mxu0 %v793
        %795 = vmatprep.subr.mxu0 0.0
        %v796 = vand.u32 %v297, 4294901760
        %v797 = vsub.f32 %v297, %v796
        %v798 = vand.u32 %v797, 4294901760
        %799 = vmatpush1.xpose.msra.mxu0 %v798
        %800 = vmatprep.subr.mxu0 0.0
        %v801 = vand.u32 %v300, 4294901760
        %v802 = vsub.f32 %v300, %v801
        %v803 = vand.u32 %v802, 4294901760
        %804 = vmatpush1.xpose.msra.mxu0 %v803
        %805 = vmatprep.subr.mxu0 0.0
        %v806 = vand.u32 %v303, 4294901760
        %v807 = vsub.f32 %v303, %v806
        %v808 = vand.u32 %v807, 4294901760
        %809 = vmatpush1.xpose.msra.mxu0 %v808
        %810 = vmatprep.subr.mxu0 0.0
        %v811 = vand.u32 %v306, 4294901760
        %v812 = vsub.f32 %v306, %v811
        %v813 = vand.u32 %v812, 4294901760
        %814 = vmatpush1.xpose.msra.mxu0 %v813
        %815 = vmatprep.subr.mxu0 0.0
        %v816 = vand.u32 %v309, 4294901760
        %v817 = vsub.f32 %v309, %v816
        %v818 = vand.u32 %v817, 4294901760
        %819 = vmatpush1.xpose.msra.mxu0 %v818
        %820 = vmatprep.subr.mxu0 0.0
        %v821 = vand.u32 %v312, 4294901760
        %v822 = vsub.f32 %v312, %v821
        %v823 = vand.u32 %v822, 4294901760
        %824 = vmatpush1.xpose.msra.mxu0 %v823
        %825 = vmatprep.subr.mxu0 0.0
        %v826 = vand.u32 %v315, 4294901760
        %v827 = vsub.f32 %v315, %v826
        %v828 = vand.u32 %v827, 4294901760
        %829 = vmatpush1.xpose.msra.mxu0 %v828
        %830 = vmatprep.subr.mxu0 0.0
        %v831 = vand.u32 %v318, 4294901760
        %v832 = vsub.f32 %v318, %v831
        %v833 = vand.u32 %v832, 4294901760
        %834 = vmatpush1.xpose.msra.mxu0 %v833
        %835 = vmatprep.subr.mxu0 0.0
        %836 = vmatpush1.xpose.msra.mxu0 0.0
        %837 = vmatprep.subr.mxu0 0.0
        %838 = vmatpush1.xpose.msra.mxu0 0.0
        %839 = vmatprep.subr.mxu0 0.0
        %840 = vmatpush1.xpose.msra.mxu0 0.0
        %841 = vmatprep.subr.mxu0 0.0
        %842 = vmatpush1.xpose.msra.mxu0 0.0
        %843 = vmatprep.subr.mxu0 0.0
        %844 = vmatpush1.xpose.msra.mxu0 0.0
        %845 = vmatprep.subr.mxu0 0.0
        %846 = vmatpush1.xpose.msra.mxu0 0.0
        %847 = vmatprep.subr.mxu0 0.0
        %848 = vmatpush1.xpose.msra.mxu0 0.0
        %849 = vmatprep.subr.mxu0 0.0
        %850 = vmatpush1.xpose.msra.mxu0 0.0
        %851 = vmatprep.subr.mxu0 0.0
        %852 = vmatpush1.xpose.msra.mxu0 0.0
        %853 = vmatprep.subr.mxu0 0.0
        %854 = vmatpush1.xpose.msra.mxu0 0.0
        %855 = vmatprep.subr.mxu0 0.0
        %856 = vmatpush1.xpose.msra.mxu0 0.0
        %857 = vmatprep.subr.mxu0 0.0
        %858 = vmatpush1.xpose.msra.mxu0 0.0
        %859 = vmatprep.subr.mxu0 0.0
        %860 = vmatpush1.xpose.msra.mxu0 0.0
        %861 = vmatprep.subr.mxu0 0.0
        %862 = vmatpush1.xpose.msra.mxu0 0.0
        %863 = vmatprep.subr.mxu0 0.0
        %864 = vmatpush1.xpose.msra.mxu0 0.0
        %865 = vmatprep.subr.mxu0 0.0
        %866 = vmatpush1.xpose.msra.mxu0 0.0
        %867 = vmatprep.mubr.f32.mxu0 0.0
        %v868 = vand.u32 %v270, 4294901760
        %869 = vmatmul.mubr.f32.gmra.mrb[0].mxu0 %v868
        %v870 = vpop.f32.mrb[0].mxu0
        %v871 = vadd.f32 %v752, %v870
        %v872 = vpop.f32.mrb[0].mxu0
        %873 = vdwg.mxu0
        %874 = vmatprep.subr.mxu0 0.0
        %v875 = vand.u32 %v273, 4294901760
        %876 = vmatpush1.xpose.msra.mxu0 %v875
        %877 = vmatprep.subr.mxu0 0.0
        %v878 = vand.u32 %v276, 4294901760
        %879 = vmatpush1.xpose.msra.mxu0 %v878
        %880 = vmatprep.subr.mxu0 0.0
        %v881 = vand.u32 %v279, 4294901760
        %882 = vmatpush1.xpose.msra.mxu0 %v881
        %883 = vmatprep.subr.mxu0 0.0
        %v884 = vand.u32 %v282, 4294901760
        %885 = vmatpush1.xpose.msra.mxu0 %v884
        %886 = vmatprep.subr.mxu0 0.0
        %v887 = vand.u32 %v285, 4294901760
        %888 = vmatpush1.xpose.msra.mxu0 %v887
        %889 = vmatprep.subr.mxu0 0.0
        %v890 = vand.u32 %v288, 4294901760
        %891 = vmatpush1.xpose.msra.mxu0 %v890
        %892 = vmatprep.subr.mxu0 0.0
        %v893 = vand.u32 %v291, 4294901760
        %894 = vmatpush1.xpose.msra.mxu0 %v893
        %895 = vmatprep.subr.mxu0 0.0
        %v896 = vand.u32 %v294, 4294901760
        %897 = vmatpush1.xpose.msra.mxu0 %v896
        %898 = vmatprep.subr.mxu0 0.0
        %v899 = vand.u32 %v297, 4294901760
        %900 = vmatpush1.xpose.msra.mxu0 %v899
        %901 = vmatprep.subr.mxu0 0.0
        %v902 = vand.u32 %v300, 4294901760
        %903 = vmatpush1.xpose.msra.mxu0 %v902
        %904 = vmatprep.subr.mxu0 0.0
        %v905 = vand.u32 %v303, 4294901760
        %906 = vmatpush1.xpose.msra.mxu0 %v905
        %907 = vmatprep.subr.mxu0 0.0
        %v908 = vand.u32 %v306, 4294901760
        %909 = vmatpush1.xpose.msra.mxu0 %v908
        %910 = vmatprep.subr.mxu0 0.0
        %v911 = vand.u32 %v309, 4294901760
        %912 = vmatpush1.xpose.msra.mxu0 %v911
        %913 = vmatprep.subr.mxu0 0.0
        %v914 = vand.u32 %v312, 4294901760
        %915 = vmatpush1.xpose.msra.mxu0 %v914
        %916 = vmatprep.subr.mxu0 0.0
        %v917 = vand.u32 %v315, 4294901760
        %918 = vmatpush1.xpose.msra.mxu0 %v917
        %919 = vmatprep.subr.mxu0 0.0
        %v920 = vand.u32 %v318, 4294901760
        %921 = vmatpush1.xpose.msra.mxu0 %v920
        %922 = vmatprep.subr.mxu0 0.0
        %923 = vmatpush1.xpose.msra.mxu0 0.0
        %924 = vmatprep.subr.mxu0 0.0
        %925 = vmatpush1.xpose.msra.mxu0 0.0
        %926 = vmatprep.subr.mxu0 0.0
        %927 = vmatpush1.xpose.msra.mxu0 0.0
        %928 = vmatprep.subr.mxu0 0.0
        %929 = vmatpush1.xpose.msra.mxu0 0.0
        %930 = vmatprep.subr.mxu0 0.0
        %931 = vmatpush1.xpose.msra.mxu0 0.0
        %932 = vmatprep.subr.mxu0 0.0
        %933 = vmatpush1.xpose.msra.mxu0 0.0
        %934 = vmatprep.subr.mxu0 0.0
        %935 = vmatpush1.xpose.msra.mxu0 0.0
        %936 = vmatprep.subr.mxu0 0.0
        %937 = vmatpush1.xpose.msra.mxu0 0.0
        %938 = vmatprep.subr.mxu0 0.0
        %939 = vmatpush1.xpose.msra.mxu0 0.0
        %940 = vmatprep.subr.mxu0 0.0
        %941 = vmatpush1.xpose.msra.mxu0 0.0
        %942 = vmatprep.subr.mxu0 0.0
        %943 = vmatpush1.xpose.msra.mxu0 0.0
        %944 = vmatprep.subr.mxu0 0.0
        %945 = vmatpush1.xpose.msra.mxu0 0.0
        %946 = vmatprep.subr.mxu0 0.0
        %947 = vmatpush1.xpose.msra.mxu0 0.0
        %948 = vmatprep.subr.mxu0 0.0
        %949 = vmatpush1.xpose.msra.mxu0 0.0
        %950 = vmatprep.subr.mxu0 0.0
        %951 = vmatpush1.xpose.msra.mxu0 0.0
        %952 = vmatprep.subr.mxu0 0.0
        %953 = vmatpush1.xpose.msra.mxu0 0.0
        %954 = vmatprep.mubr.f32.mxu0 0.0
        %v955 = vand.u32 %v270, 4294901760
        %956 = vmatmul.mubr.f32.gmra.mrb[0].mxu0 %v955
        %v957 = vpop.f32.mrb[0].mxu0
        %v958 = vadd.f32 %v871, %v957
        %v959 = vpop.f32.mrb[0].mxu0
        %960 = vdwg.mxu0
        %v961 = vmax.f32 %v958, 0.0
        %v962 = vld [vmem:[%s2] sm:$0x3]
        %v963 = vld [vmem:[%s3] sm:$0x3]
        %965 = vset.pattern.permute.xlu0 0
        %966 = vperm.xlu0 %965, %v963
        %v967 = vpop.permute.xlu0 %966
        %vm969 = vcmask 64512
        %v971 = vsel %vm969, %v962, 0
        %973 = vmatprep.subr.mxu0 0.0
        %v974 = vand.u32 %v961, 4294901760
        %975 = vmatpush1.msra.mxu0 %v974
        %976 = vmatprep.subr.mxu0 0.0
        %977 = vmatpush1.msra.mxu0 0.0
        %978 = vmatprep.subr.mxu0 0.0
        %979 = vmatpush1.msra.mxu0 0.0
        %980 = vmatprep.subr.mxu0 0.0
        %981 = vmatpush1.msra.mxu0 0.0
        %982 = vmatprep.subr.mxu0 0.0
        %983 = vmatpush1.msra.mxu0 0.0
        %984 = vmatprep.subr.mxu0 0.0
        %985 = vmatpush1.msra.mxu0 0.0
        %986 = vmatprep.subr.mxu0 0.0
        %987 = vmatpush1.msra.mxu0 0.0
        %988 = vmatprep.subr.mxu0 0.0
        %989 = vmatpush1.msra.mxu0 0.0
        %990 = vmatprep.subr.mxu0 0.0
        %991 = vmatpush1.msra.mxu0 0.0
        %992 = vmatprep.subr.mxu0 0.0
        %993 = vmatpush1.msra.mxu0 0.0
        %994 = vmatprep.subr.mxu0 0.0
        %995 = vmatpush1.msra.mxu0 0.0
        %996 = vmatprep.subr.mxu0 0.0
        %997 = vmatpush1.msra.mxu0 0.0
        %998 = vmatprep.subr.mxu0 0.0
        %999 = vmatpush1.msra.mxu0 0.0
        %1000 = vmatprep.subr.mxu0 0.0
        %1001 = vmatpush1.msra.mxu0 0.0
        %1002 = vmatprep.subr.mxu0 0.0
        %1003 = vmatpush1.msra.mxu0 0.0
        %1004 = vmatprep.subr.mxu0 0.0
        %1005 = vmatpush1.msra.mxu0 0.0
        %1006 = vmatprep.subr.mxu0 0.0
        %1007 = vmatpush1.msra.mxu0 0.0
        %1008 = vmatprep.subr.mxu0 0.0
        %1009 = vmatpush1.msra.mxu0 0.0
        %1010 = vmatprep.subr.mxu0 0.0
        %1011 = vmatpush1.msra.mxu0 0.0
        %1012 = vmatprep.subr.mxu0 0.0
        %1013 = vmatpush1.msra.mxu0 0.0
        %1014 = vmatprep.subr.mxu0 0.0
        %1015 = vmatpush1.msra.mxu0 0.0
        %1016 = vmatprep.subr.mxu0 0.0
        %1017 = vmatpush1.msra.mxu0 0.0
        %1018 = vmatprep.subr.mxu0 0.0
        %1019 = vmatpush1.msra.mxu0 0.0
        %1020 = vmatprep.subr.mxu0 0.0
        %1021 = vmatpush1.msra.mxu0 0.0
        %1022 = vmatprep.subr.mxu0 0.0
        %1023 = vmatpush1.msra.mxu0 0.0
        %1024 = vmatprep.subr.mxu0 0.0
        %1025 = vmatpush1.msra.mxu0 0.0
        %1026 = vmatprep.subr.mxu0 0.0
        %1027 = vmatpush1.msra.mxu0 0.0
        %1028 = vmatprep.subr.mxu0 0.0
        %1029 = vmatpush1.msra.mxu0 0.0
        %1030 = vmatprep.subr.mxu0 0.0
        %1031 = vmatpush1.msra.mxu0 0.0
        %1032 = vmatprep.subr.mxu0 0.0
        %1033 = vmatpush1.msra.mxu0 0.0
        %1034 = vmatprep.subr.mxu0 0.0
        %1035 = vmatpush1.msra.mxu0 0.0
        %1036 = vmatprep.subr.mxu0 0.0
        %1037 = vmatpush1.msra.mxu0 0.0
        %1038 = vmatprep.mubr.f32.mxu0 0.0
        %v1039 = vand.u32 %v971, 4294901760
        %v1040 = vsub.f32 %v971, %v1039
        %v1041 = vand.u32 %v1040, 4294901760
        %v1042 = vsub.f32 %v1040, %v1041
        %v1043 = vand.u32 %v1042, 4294901760
        %1044 = vmatmul.mubr.f32.gmra.mrb[0].mxu0 %v1043
        %v1045 = vpop.f32.mrb[0].mxu0
        %v1046 = vadd.f32 %v967, %v1045
        %v1047 = vpop.f32.mrb[0].mxu0
        %1048 = vdwg.mxu0
        %1049 = vmatprep.subr.mxu0 0.0
        %v1050 = vand.u32 %v961, 4294901760
        %v1051 = vsub.f32 %v961, %v1050
        %v1052 = vand.u32 %v1051, 4294901760
        %v1053 = vsub.f32 %v1051, %v1052
        %v1054 = vand.u32 %v1053, 4294901760
        %1055 = vmatpush1.msra.mxu0 %v1054
        %1056 = vmatprep.subr.mxu0 0.0
        %1057 = vmatpush1.msra.mxu0 0.0
        %1058 = vmatprep.subr.mxu0 0.0
        %1059 = vmatpush1.msra.mxu0 0.0
        %1060 = vmatprep.subr.mxu0 0.0
        %1061 = vmatpush1.msra.mxu0 0.0
        %1062 = vmatprep.subr.mxu0 0.0
        %1063 = vmatpush1.msra.mxu0 0.0
        %1064 = vmatprep.subr.mxu0 0.0
        %1065 = vmatpush1.msra.mxu0 0.0
        %1066 = vmatprep.subr.mxu0 0.0
        %1067 = vmatpush1.msra.mxu0 0.0
        %1068 = vmatprep.subr.mxu0 0.0
        %1069 = vmatpush1.msra.mxu0 0.0
        %1070 = vmatprep.subr.mxu0 0.0
        %1071 = vmatpush1.msra.mxu0 0.0
        %1072 = vmatprep.subr.mxu0 0.0
        %1073 = vmatpush1.msra.mxu0 0.0
        %1074 = vmatprep.subr.mxu0 0.0
        %1075 = vmatpush1.msra.mxu0 0.0
        %1076 = vmatprep.subr.mxu0 0.0
        %1077 = vmatpush1.msra.mxu0 0.0
        %1078 = vmatprep.subr.mxu0 0.0
        %1079 = vmatpush1.msra.mxu0 0.0
        %1080 = vmatprep.subr.mxu0 0.0
        %1081 = vmatpush1.msra.mxu0 0.0
        %1082 = vmatprep.subr.mxu0 0.0
        %1083 = vmatpush1.msra.mxu0 0.0
        %1084 = vmatprep.subr.mxu0 0.0
        %1085 = vmatpush1.msra.mxu0 0.0
        %1086 = vmatprep.subr.mxu0 0.0
        %1087 = vmatpush1.msra.mxu0 0.0
        %1088 = vmatprep.subr.mxu0 0.0
        %1089 = vmatpush1.msra.mxu0 0.0
        %1090 = vmatprep.subr.mxu0 0.0
        %1091 = vmatpush1.msra.mxu0 0.0
        %1092 = vmatprep.subr.mxu0 0.0
        %1093 = vmatpush1.msra.mxu0 0.0
        %1094 = vmatprep.subr.mxu0 0.0
        %1095 = vmatpush1.msra.mxu0 0.0
        %1096 = vmatprep.subr.mxu0 0.0
        %1097 = vmatpush1.msra.mxu0 0.0
        %1098 = vmatprep.subr.mxu0 0.0
        %1099 = vmatpush1.msra.mxu0 0.0
        %1100 = vmatprep.subr.mxu0 0.0
        %1101 = vmatpush1.msra.mxu0 0.0
        %1102 = vmatprep.subr.mxu0 0.0
        %1103 = vmatpush1.msra.mxu0 0.0
        %1104 = vmatprep.subr.mxu0 0.0
        %1105 = vmatpush1.msra.mxu0 0.0
        %1106 = vmatprep.subr.mxu0 0.0
        %1107 = vmatpush1.msra.mxu0 0.0
        %1108 = vmatprep.subr.mxu0 0.0
        %1109 = vmatpush1.msra.mxu0 0.0
        %1110 = vmatprep.subr.mxu0 0.0
        %1111 = vmatpush1.msra.mxu0 0.0
        %1112 = vmatprep.subr.mxu0 0.0
        %1113 = vmatpush1.msra.mxu0 0.0
        %1114 = vmatprep.subr.mxu0 0.0
        %1115 = vmatpush1.msra.mxu0 0.0
        %1116 = vmatprep.subr.mxu0 0.0
        %1117 = vmatpush1.msra.mxu0 0.0
        %1118 = vmatprep.mubr.f32.mxu0 0.0
        %v1119 = vand.u32 %v971, 4294901760
        %1120 = vmatmul.mubr.f32.gmra.mrb[0].mxu0 %v1119
        %v1121 = vpop.f32.mrb[0].mxu0
        %v1122 = vadd.f32 %v1046, %v1121
        %v1123 = vpop.f32.mrb[0].mxu0
        %1124 = vdwg.mxu0
        %1125 = vmatprep.subr.mxu0 0.0
        %v1126 = vand.u32 %v961, 4294901760
        %v1127 = vsub.f32 %v961, %v1126
        %1128 = vmatpush1.msra.mxu0 %v1127
        %1129 = vmatprep.subr.mxu0 0.0
        %1130 = vmatpush1.msra.mxu0 0.0
        %1131 = vmatprep.subr.mxu0 0.0
        %1132 = vmatpush1.msra.mxu0 0.0
        %1133 = vmatprep.subr.mxu0 0.0
        %1134 = vmatpush1.msra.mxu0 0.0
        %1135 = vmatprep.subr.mxu0 0.0
        %1136 = vmatpush1.msra.mxu0 0.0
        %1137 = vmatprep.subr.mxu0 0.0
        %1138 = vmatpush1.msra.mxu0 0.0
        %1139 = vmatprep.subr.mxu0 0.0
        %1140 = vmatpush1.msra.mxu0 0.0
        %1141 = vmatprep.subr.mxu0 0.0
        %1142 = vmatpush1.msra.mxu0 0.0
        %1143 = vmatprep.subr.mxu0 0.0
        %1144 = vmatpush1.msra.mxu0 0.0
        %1145 = vmatprep.subr.mxu0 0.0
        %1146 = vmatpush1.msra.mxu0 0.0
        %1147 = vmatprep.subr.mxu0 0.0
        %1148 = vmatpush1.msra.mxu0 0.0
        %1149 = vmatprep.subr.mxu0 0.0
        %1150 = vmatpush1.msra.mxu0 0.0
        %1151 = vmatprep.subr.mxu0 0.0
        %1152 = vmatpush1.msra.mxu0 0.0
        %1153 = vmatprep.subr.mxu0 0.0
        %1154 = vmatpush1.msra.mxu0 0.0
        %1155 = vmatprep.subr.mxu0 0.0
        %1156 = vmatpush1.msra.mxu0 0.0
        %1157 = vmatprep.subr.mxu0 0.0
        %1158 = vmatpush1.msra.mxu0 0.0
        %1159 = vmatprep.subr.mxu0 0.0
        %1160 = vmatpush1.msra.mxu0 0.0
        %1161 = vmatprep.subr.mxu0 0.0
        %1162 = vmatpush1.msra.mxu0 0.0
        %1163 = vmatprep.subr.mxu0 0.0
        %1164 = vmatpush1.msra.mxu0 0.0
        %1165 = vmatprep.subr.mxu0 0.0
        %1166 = vmatpush1.msra.mxu0 0.0
        %1167 = vmatprep.subr.mxu0 0.0
        %1168 = vmatpush1.msra.mxu0 0.0
        %1169 = vmatprep.subr.mxu0 0.0
        %1170 = vmatpush1.msra.mxu0 0.0
        %1171 = vmatprep.subr.mxu0 0.0
        %1172 = vmatpush1.msra.mxu0 0.0
        %1173 = vmatprep.subr.mxu0 0.0
        %1174 = vmatpush1.msra.mxu0 0.0
        %1175 = vmatprep.subr.mxu0 0.0
        %1176 = vmatpush1.msra.mxu0 0.0
        %1177 = vmatprep.subr.mxu0 0.0
        %1178 = vmatpush1.msra.mxu0 0.0
        %1179 = vmatprep.subr.mxu0 0.0
        %1180 = vmatpush1.msra.mxu0 0.0
        %1181 = vmatprep.subr.mxu0 0.0
        %1182 = vmatpush1.msra.mxu0 0.0
        %1183 = vmatprep.subr.mxu0 0.0
        %1184 = vmatpush1.msra.mxu0 0.0
        %1185 = vmatprep.subr.mxu0 0.0
        %1186 = vmatpush1.msra.mxu0 0.0
        %1187 = vmatprep.subr.mxu0 0.0
        %1188 = vmatpush1.msra.mxu0 0.0
        %1189 = vmatprep.subr.mxu0 0.0
        %1190 = vmatpush1.msra.mxu0 0.0
        %1191 = vmatprep.mubr.f32.mxu0 0.0
        %v1192 = vand.u32 %v971, 4294901760
        %v1193 = vsub.f32 %v971, %v1192
        %1194 = vmatmul.mubr.f32.gmra.mrb[0].mxu0 %v1193
        %v1195 = vpop.f32.mrb[0].mxu0
        %v1196 = vadd.f32 %v1122, %v1195
        %v1197 = vpop.f32.mrb[0].mxu0
        %1198 = vdwg.mxu0
        %1199 = vmatprep.subr.mxu0 0.0
        %v1200 = vand.u32 %v961, 4294901760
        %1201 = vmatpush1.msra.mxu0 %v1200
        %1202 = vmatprep.subr.mxu0 0.0
        %1203 = vmatpush1.msra.mxu0 0.0
        %1204 = vmatprep.subr.mxu0 0.0
        %1205 = vmatpush1.msra.mxu0 0.0
        %1206 = vmatprep.subr.mxu0 0.0
        %1207 = vmatpush1.msra.mxu0 0.0
        %1208 = vmatprep.subr.mxu0 0.0
        %1209 = vmatpush1.msra.mxu0 0.0
        %1210 = vmatprep.subr.mxu0 0.0
        %1211 = vmatpush1.msra.mxu0 0.0
        %1212 = vmatprep.subr.mxu0 0.0
        %1213 = vmatpush1.msra.mxu0 0.0
        %1214 = vmatprep.subr.mxu0 0.0
        %1215 = vmatpush1.msra.mxu0 0.0
        %1216 = vmatprep.subr.mxu0 0.0
        %1217 = vmatpush1.msra.mxu0 0.0
        %1218 = vmatprep.subr.mxu0 0.0
        %1219 = vmatpush1.msra.mxu0 0.0
        %1220 = vmatprep.subr.mxu0 0.0
        %1221 = vmatpush1.msra.mxu0 0.0
        %1222 = vmatprep.subr.mxu0 0.0
        %1223 = vmatpush1.msra.mxu0 0.0
        %1224 = vmatprep.subr.mxu0 0.0
        %1225 = vmatpush1.msra.mxu0 0.0
        %1226 = vmatprep.subr.mxu0 0.0
        %1227 = vmatpush1.msra.mxu0 0.0
        %1228 = vmatprep.subr.mxu0 0.0
        %1229 = vmatpush1.msra.mxu0 0.0
        %1230 = vmatprep.subr.mxu0 0.0
        %1231 = vmatpush1.msra.mxu0 0.0
        %1232 = vmatprep.subr.mxu0 0.0
        %1233 = vmatpush1.msra.mxu0 0.0
        %1234 = vmatprep.subr.mxu0 0.0
        %1235 = vmatpush1.msra.mxu0 0.0
        %1236 = vmatprep.subr.mxu0 0.0
        %1237 = vmatpush1.msra.mxu0 0.0
        %1238 = vmatprep.subr.mxu0 0.0
        %1239 = vmatpush1.msra.mxu0 0.0
        %1240 = vmatprep.subr.mxu0 0.0
        %1241 = vmatpush1.msra.mxu0 0.0
        %1242 = vmatprep.subr.mxu0 0.0
        %1243 = vmatpush1.msra.mxu0 0.0
        %1244 = vmatprep.subr.mxu0 0.0
        %1245 = vmatpush1.msra.mxu0 0.0
        %1246 = vmatprep.subr.mxu0 0.0
        %1247 = vmatpush1.msra.mxu0 0.0
        %1248 = vmatprep.subr.mxu0 0.0
        %1249 = vmatpush1.msra.mxu0 0.0
        %1250 = vmatprep.subr.mxu0 0.0
        %1251 = vmatpush1.msra.mxu0 0.0
        %1252 = vmatprep.subr.mxu0 0.0
        %1253 = vmatpush1.msra.mxu0 0.0
        %1254 = vmatprep.subr.mxu0 0.0
        %1255 = vmatpush1.msra.mxu0 0.0
        %1256 = vmatprep.subr.mxu0 0.0
        %1257 = vmatpush1.msra.mxu0 0.0
        %1258 = vmatprep.subr.mxu0 0.0
        %1259 = vmatpush1.msra.mxu0 0.0
        %1260 = vmatprep.subr.mxu0 0.0
        %1261 = vmatpush1.msra.mxu0 0.0
        %1262 = vmatprep.subr.mxu0 0.0
        %1263 = vmatpush1.msra.mxu0 0.0
        %1264 = vmatprep.mubr.f32.mxu0 0.0
        %v1265 = vand.u32 %v971, 4294901760
        %v1266 = vsub.f32 %v971, %v1265
        %v1267 = vand.u32 %v1266, 4294901760
        %1268 = vmatmul.mubr.f32.gmra.mrb[0].mxu0 %v1267
        %v1269 = vpop.f32.mrb[0].mxu0
        %v1270 = vadd.f32 %v1196, %v1269
        %v1271 = vpop.f32.mrb[0].mxu0
        %1272 = vdwg.mxu0
        %1273 = vmatprep.subr.mxu0 0.0
        %v1274 = vand.u32 %v961, 4294901760
        %v1275 = vsub.f32 %v961, %v1274
        %v1276 = vand.u32 %v1275, 4294901760
        %1277 = vmatpush1.msra.mxu0 %v1276
        %1278 = vmatprep.subr.mxu0 0.0
        %1279 = vmatpush1.msra.mxu0 0.0
        %1280 = vmatprep.subr.mxu0 0.0
        %1281 = vmatpush1.msra.mxu0 0.0
        %1282 = vmatprep.subr.mxu0 0.0
        %1283 = vmatpush1.msra.mxu0 0.0
        %1284 = vmatprep.subr.mxu0 0.0
        %1285 = vmatpush1.msra.mxu0 0.0
        %1286 = vmatprep.subr.mxu0 0.0
        %1287 = vmatpush1.msra.mxu0 0.0
        %1288 = vmatprep.subr.mxu0 0.0
        %1289 = vmatpush1.msra.mxu0 0.0
        %1290 = vmatprep.subr.mxu0 0.0
        %1291 = vmatpush1.msra.mxu0 0.0
        %1292 = vmatprep.subr.mxu0 0.0
        %1293 = vmatpush1.msra.mxu0 0.0
        %1294 = vmatprep.subr.mxu0 0.0
        %1295 = vmatpush1.msra.mxu0 0.0
        %1296 = vmatprep.subr.mxu0 0.0
        %1297 = vmatpush1.msra.mxu0 0.0
        %1298 = vmatprep.subr.mxu0 0.0
        %1299 = vmatpush1.msra.mxu0 0.0
        %1300 = vmatprep.subr.mxu0 0.0
        %1301 = vmatpush1.msra.mxu0 0.0
        %1302 = vmatprep.subr.mxu0 0.0
        %1303 = vmatpush1.msra.mxu0 0.0
        %1304 = vmatprep.subr.mxu0 0.0
        %1305 = vmatpush1.msra.mxu0 0.0
        %1306 = vmatprep.subr.mxu0 0.0
        %1307 = vmatpush1.msra.mxu0 0.0
        %1308 = vmatprep.subr.mxu0 0.0
        %1309 = vmatpush1.msra.mxu0 0.0
        %1310 = vmatprep.subr.mxu0 0.0
        %1311 = vmatpush1.msra.mxu0 0.0
        %1312 = vmatprep.subr.mxu0 0.0
        %1313 = vmatpush1.msra.mxu0 0.0
        %1314 = vmatprep.subr.mxu0 0.0
        %1315 = vmatpush1.msra.mxu0 0.0
        %1316 = vmatprep.subr.mxu0 0.0
        %1317 = vmatpush1.msra.mxu0 0.0
        %1318 = vmatprep.subr.mxu0 0.0
        %1319 = vmatpush1.msra.mxu0 0.0
        %1320 = vmatprep.subr.mxu0 0.0
        %1321 = vmatpush1.msra.mxu0 0.0
        %1322 = vmatprep.subr.mxu0 0.0
        %1323 = vmatpush1.msra.mxu0 0.0
        %1324 = vmatprep.subr.mxu0 0.0
        %1325 = vmatpush1.msra.mxu0 0.0
        %1326 = vmatprep.subr.mxu0 0.0
        %1327 = vmatpush1.msra.mxu0 0.0
        %1328 = vmatprep.subr.mxu0 0.0
        %1329 = vmatpush1.msra.mxu0 0.0
        %1330 = vmatprep.subr.mxu0 0.0
        %1331 = vmatpush1.msra.mxu0 0.0
        %1332 = vmatprep.subr.mxu0 0.0
        %1333 = vmatpush1.msra.mxu0 0.0
        %1334 = vmatprep.subr.mxu0 0.0
        %1335 = vmatpush1.msra.mxu0 0.0
        %1336 = vmatprep.subr.mxu0 0.0
        %1337 = vmatpush1.msra.mxu0 0.0
        %1338 = vmatprep.subr.mxu0 0.0
        %1339 = vmatpush1.msra.mxu0 0.0
        %1340 = vmatprep.mubr.f32.mxu0 0.0
        %v1341 = vand.u32 %v971, 4294901760
        %1342 = vmatmul.mubr.f32.gmra.mrb[0].mxu0 %v1341
        %v1343 = vpop.f32.mrb[0].mxu0
        %v1344 = vadd.f32 %v1270, %v1343
        %v1345 = vpop.f32.mrb[0].mxu0
        %1346 = vdwg.mxu0
        %1347 = vmatprep.subr.mxu0 0.0
        %v1348 = vand.u32 %v961, 4294901760
        %1349 = vmatpush1.msra.mxu0 %v1348
        %1350 = vmatprep.subr.mxu0 0.0
        %1351 = vmatpush1.msra.mxu0 0.0
        %1352 = vmatprep.subr.mxu0 0.0
        %1353 = vmatpush1.msra.mxu0 0.0
        %1354 = vmatprep.subr.mxu0 0.0
        %1355 = vmatpush1.msra.mxu0 0.0
        %1356 = vmatprep.subr.mxu0 0.0
        %1357 = vmatpush1.msra.mxu0 0.0
        %1358 = vmatprep.subr.mxu0 0.0
        %1359 = vmatpush1.msra.mxu0 0.0
        %1360 = vmatprep.subr.mxu0 0.0
        %1361 = vmatpush1.msra.mxu0 0.0
        %1362 = vmatprep.subr.mxu0 0.0
        %1363 = vmatpush1.msra.mxu0 0.0
        %1364 = vmatprep.subr.mxu0 0.0
        %1365 = vmatpush1.msra.mxu0 0.0
        %1366 = vmatprep.subr.mxu0 0.0
        %1367 = vmatpush1.msra.mxu0 0.0
        %1368 = vmatprep.subr.mxu0 0.0
        %1369 = vmatpush1.msra.mxu0 0.0
        %1370 = vmatprep.subr.mxu0 0.0
        %1371 = vmatpush1.msra.mxu0 0.0
        %1372 = vmatprep.subr.mxu0 0.0
        %1373 = vmatpush1.msra.mxu0 0.0
        %1374 = vmatprep.subr.mxu0 0.0
        %1375 = vmatpush1.msra.mxu0 0.0
        %1376 = vmatprep.subr.mxu0 0.0
        %1377 = vmatpush1.msra.mxu0 0.0
        %1378 = vmatprep.subr.mxu0 0.0
        %1379 = vmatpush1.msra.mxu0 0.0
        %1380 = vmatprep.subr.mxu0 0.0
        %1381 = vmatpush1.msra.mxu0 0.0
        %1382 = vmatprep.subr.mxu0 0.0
        %1383 = vmatpush1.msra.mxu0 0.0
        %1384 = vmatprep.subr.mxu0 0.0
        %1385 = vmatpush1.msra.mxu0 0.0
        %1386 = vmatprep.subr.mxu0 0.0
        %1387 = vmatpush1.msra.mxu0 0.0
        %1388 = vmatprep.subr.mxu0 0.0
        %1389 = vmatpush1.msra.mxu0 0.0
        %1390 = vmatprep.subr.mxu0 0.0
        %1391 = vmatpush1.msra.mxu0 0.0
        %1392 = vmatprep.subr.mxu0 0.0
        %1393 = vmatpush1.msra.mxu0 0.0
        %1394 = vmatprep.subr.mxu0 0.0
        %1395 = vmatpush1.msra.mxu0 0.0
        %1396 = vmatprep.subr.mxu0 0.0
        %1397 = vmatpush1.msra.mxu0 0.0
        %1398 = vmatprep.subr.mxu0 0.0
        %1399 = vmatpush1.msra.mxu0 0.0
        %1400 = vmatprep.subr.mxu0 0.0
        %1401 = vmatpush1.msra.mxu0 0.0
        %1402 = vmatprep.subr.mxu0 0.0
        %1403 = vmatpush1.msra.mxu0 0.0
        %1404 = vmatprep.subr.mxu0 0.0
        %1405 = vmatpush1.msra.mxu0 0.0
        %1406 = vmatprep.subr.mxu0 0.0
        %1407 = vmatpush1.msra.mxu0 0.0
        %1408 = vmatprep.subr.mxu0 0.0
        %1409 = vmatpush1.msra.mxu0 0.0
        %1410 = vmatprep.subr.mxu0 0.0
        %1411 = vmatpush1.msra.mxu0 0.0
        %1412 = vmatprep.mubr.f32.mxu0 0.0
        %v1413 = vand.u32 %v971, 4294901760
        %1414 = vmatmul.mubr.f32.gmra.mrb[0].mxu0 %v1413
        %v1415 = vpop.f32.mrb[0].mxu0
        %v1416 = vadd.f32 %v1344, %v1415
        %v1417 = vpop.f32.mrb[0].mxu0
        %1418 = vdwg.mxu0
        %v1419 = vtanh.pop %v1416
        %1420 = vst [vmem:[%s230] sm:$0x3] %v1419
        %s1421 = sand.u32 %s137, 1
        %s1422 = scalar_lea.sflag [#allocation3], %s1421
        %s1423 = sand.u32 %s137, 1
        %s1424 = smul.addr %s1423, 2
        %s1425 = scalar_lea.vmem [#allocation2], %s1424
        // Predicated region
        $region41: #{tpu_custom_call.1} parent=39 // pred_check
          %p1426 = pneg %p147
        $region42: #{tpu_custom_call.1} parent=39 // pred_check_branch
          %1428 = sbr.rel (%p1426) target = $region44
        $region43: #{tpu_custom_call.1} parent=39 // pred_region
          %s1430 = ssub.s32 32, 32
          %1431 = vsyncadd %s1422, %s1430
          %s1432 = smul.addr %s19, 32
          %s1433 = scalar_lea.hbm %s5, %s1432
          %s1435 = sshll.u32 %s1425, 4
          %s1436 = int_to_ptr.vmem [resolvable:$true] %s1435
          %1438 = dma.vmem_to_hbm [thread:$0]  %s1436, 32, %s1433, %s1422
        $region44: #{tpu_custom_call.1} parent=39 // pred_fallthru
          _
      $region40: #{tpu_custom_call.1} parent=5 // pred_fallthru
        _
      %p1439 = scmp.le.s32.totalorder 2, %s14
      // Predicated region
      $region45: #{tpu_custom_call.1} parent=5 // pred_check
        %p1440 = pneg %p1439
      $region46: #{tpu_custom_call.1} parent=5 // pred_check_branch
        %1442 = sbr.rel (%p1440) target = $region48
      $region47: #{tpu_custom_call.1} parent=5 // pred_region
        %s1443 = ssub.s32 %s14, 2
        // Predicated region
        $region49: #{tpu_custom_call.1} parent=47 // pred_check
          %p1444 = pneg %p153
        $region50: #{tpu_custom_call.1} parent=47 // pred_check_branch
          %1446 = sbr.rel (%p1444) target = $region52
        $region51: #{tpu_custom_call.1} parent=47 // pred_region
          %s1447 = sand.u32 %s138, 1
          %s1448 = scalar_lea.sflag [#allocation3], %s1447
          %s1449 = sand.u32 %s138, 1
          %s1450 = smul.addr %s1449, 2
          %s1451 = scalar_lea.vmem [#allocation2], %s1450
          %1452 = dma.done %s1448, 32
        $region52: #{tpu_custom_call.1} parent=47 // pred_fallthru
          _
      $region48: #{tpu_custom_call.1} parent=5 // pred_fallthru
        _
    $region6: #{tpu_custom_call.1} parent=1 // loop_footer
      %s18 = sadd.s32 1, %s14
    $region7: #{tpu_custom_call.1} parent=1 // loop_footer_branch
      %13 = sbr.rel target = $region3
    $region8: #{tpu_custom_call.1} parent=1 // loop_exit
      _
    %1453 = vsyncpa [#allocation3], 1
    %s1454 = scalar_lea.sflag [#allocation3], 1
    %1455 = vsyncpa %s1454, 1

</llo_original>
